<compile_context>
chip_gen: v5e
topology: v5e:2x2
jax: 0.10.0
libtpu: 0.0.40
codegen_flags: <defaults>
</compile_context>

<pallas_src>
import jax
import jax.numpy as jnp
from jax.experimental import pallas as pl
from jax.experimental.pallas import tpu as pltpu


def _round_up(n, m):
    return ((n + m - 1) // m) * m


def _attentive_pool_kernel(x_ref, w_ref, o_ref):
    # x_ref: (TB, S, D), w_ref: (1, D), o_ref: (TB, D)
    xf = x_ref[...].astype(jnp.float32)                  # (TB, S, D)
    w = w_ref[...].astype(jnp.float32)                   # (1, D)

    # scores[b, s] = sum_d x[b, s, d] * w[d]  -> lane-dense (TB, S)
    scores = jnp.sum(xf * w[None, :, :], axis=-1)        # (TB, S)
    # (Linear bias omitted: softmax over S is shift-invariant, so a uniform
    #  bias on the scores cancels exactly.)

    # Softmax over the sequence axis, S on the lane axis.
    m = jnp.max(scores, axis=-1, keepdims=True)          # (TB, 1)
    e = jnp.exp(scores - m)                               # (TB, S)
    denom = jnp.sum(e, axis=-1, keepdims=True)            # (TB, 1)
    attn = e / denom                                       # (TB, S)

    # Weighted sum over S as a batched MXU contraction:
    # (TB, 1, S) . (TB, S, D) -> (TB, 1, D)
    pooled = jnp.einsum(
        "bqs,bsd->bqd",
        attn[:, None, :],
        xf,
        preferred_element_type=jnp.float32,
    )[:, 0, :]                                             # (TB, D)

    o_ref[...] = pooled.astype(o_ref.dtype)


def attentive_pool(x, weight, bias=None, *, block_b=None):
    """x: (B, S, D); weight: (1, D) (torch nn.Linear layout); bias: (1,).

    The bias is accepted for API parity but has no effect on the output
    (softmax shift-invariance), so it is not used in the kernel.
    """
    del bias
    B, S, D = x.shape

    if block_b is None:
        row_bytes = S * D * jnp.dtype(x.dtype).itemsize
        # ~4 MiB x-tile per buffer => double-buffered input + f32 temporaries
        # stay comfortably inside v5e's 16 MiB default scoped VMEM and v7x's
        # 64 MiB physical VMEM.
        tb = (4 * 1024 * 1024) // max(row_bytes, 1)
        tb = max(8, min(256, (tb // 8) * 8))
        # No point making the block bigger than the (8-padded) batch.
        tb = min(tb, _round_up(B, 8))
        block_b = tb

    B_pad = _round_up(B, block_b)
    if B_pad != B:
        # Zero rows give uniform attention and a zero pooled output; sliced off.
        x = jnp.pad(x, ((0, B_pad - B), (0, 0), (0, 0)))

    w = weight.astype(jnp.float32).reshape(1, D)           # lane-major weight

    grid = (B_pad // block_b,)
    out = pl.pallas_call(
        _attentive_pool_kernel,
        out_shape=jax.ShapeDtypeStruct((B_pad, D), x.dtype),
        grid_spec=pltpu.PrefetchScalarGridSpec(
            num_scalar_prefetch=0,
            grid=grid,
            in_specs=[
                pl.BlockSpec((block_b, S, D), lambda i: (i, 0, 0)),  # x slab
                pl.BlockSpec((1, D), lambda i: (0, 0)),              # weight
            ],
            out_specs=pl.BlockSpec((block_b, D), lambda i: (i, 0)),
        ),
        compiler_params=pltpu.CompilerParams(
            dimension_semantics=("parallel",),
            vmem_limit_bytes=32 * 1024 * 1024,
        ),
    )(x, w)
    return out[:B]


def _reference(x, weight, bias):
    scores = jnp.einsum("bsd,od->bso", x, weight) + bias   # (B, S, 1)
    attn = jax.nn.softmax(scores, axis=1)
    return jnp.sum(x * attn, axis=1)                        # (B, D)


if __name__ == "__main__":
    B, S, D = 2, 8, 32
    key = jax.random.PRNGKey(0)
    kx, kw, kb = jax.random.split(key, 3)

    x = jax.random.normal(kx, (B, S, D), dtype=jnp.float32)
    # Deterministic parameter init (shapes from nn.Linear(D, 1)).
    weight = jax.random.normal(kw, (1, D), dtype=jnp.float32) * 0.1
    bias = jax.random.normal(kb, (1,), dtype=jnp.float32) * 0.1

    out = attentive_pool(x, weight, bias)
    out = jax.block_until_ready(out)

    ref = _reference(x, weight, bias)
    assert out.shape == (B, D)
    assert jnp.allclose(out, ref, atol=1e-5, rtol=1e-5)

    print("KERNEL_OK")
</pallas_src>

<mosaic_0001>
module attributes {stable_mosaic.version = 11 : i64} {
  func.func @_attentive_pool_kernel(%arg0: i32, %arg1: memref<8x8x32xf32, #tpu.memory_space<vmem>>, %arg2: memref<1x32xf32, #tpu.memory_space<vmem>>, %arg3: memref<8x32xf32, #tpu.memory_space<vmem>>) attributes {dimension_semantics = [#tpu.dimension_semantics<parallel>], iteration_bounds = array<i64: 1>, scalar_prefetch = 0 : i64, scratch_operands = 0 : i64, tpu.core_type = #tpu.core_type<tc>, window_params = [{transform_indices = @transform_0, window_bounds = array<i64: 8, 8, 32>}, {pipeline_mode = #tpu.pipeline_mode<synchronous>, transform_indices = @transform_1, window_bounds = array<i64: 1, 32>}, {transform_indices = @transform_2, window_bounds = array<i64: 8, 32>}]} {
    %c0 = arith.constant 0 : index
    %c0_0 = arith.constant 0 : index
    %c0_1 = arith.constant 0 : index
    %0 = vector.load %arg1[%c0, %c0_0, %c0_1] : memref<8x8x32xf32, #tpu.memory_space<vmem>>, vector<8x8x32xf32>
    %c0_2 = arith.constant 0 : index
    %c0_3 = arith.constant 0 : index
    %1 = vector.load %arg2[%c0_2, %c0_3] : memref<1x32xf32, #tpu.memory_space<vmem>>, vector<1x32xf32>
    %2 = vector.shape_cast %1 : vector<1x32xf32> to vector<1x1x32xf32>
    %3 = vector.broadcast %2 : vector<1x1x32xf32> to vector<8x8x32xf32>
    %4 = arith.mulf %0, %3 : vector<8x8x32xf32>
    %cst = arith.constant dense<0.000000e+00> : vector<8x8xf32>
    %5 = vector.multi_reduction <add>, %4, %cst [2] : vector<8x8x32xf32> to vector<8x8xf32>
    %cst_4 = arith.constant dense<0xFF800000> : vector<8xf32>
    %6 = vector.multi_reduction <maximumf>, %5, %cst_4 [1] : vector<8x8xf32> to vector<8xf32>
    %7 = vector.shape_cast %6 : vector<8xf32> to vector<8x1xf32>
    %8 = vector.broadcast %7 : vector<8x1xf32> to vector<8x8xf32>
    %9 = arith.subf %5, %8 : vector<8x8xf32>
    %10 = math.exp %9 : vector<8x8xf32>
    %cst_5 = arith.constant dense<0.000000e+00> : vector<8xf32>
    %11 = vector.multi_reduction <add>, %10, %cst_5 [1] : vector<8x8xf32> to vector<8xf32>
    %12 = vector.shape_cast %11 : vector<8xf32> to vector<8x1xf32>
    %13 = vector.broadcast %12 : vector<8x1xf32> to vector<8x8xf32>
    %14 = arith.divf %10, %13 : vector<8x8xf32>
    %15 = vector.shape_cast %14 : vector<8x8xf32> to vector<8x1x8xf32>
    "tpu.trace_start"() <{level = 10 : i32, message = "bqs,bsd->bqd"}> : () -> ()
    %cst_6 = arith.constant dense<0.000000e+00> : vector<8x1x32xf32>
    %16 = tpu.matmul %15, %0, %cst_6 {dimension_numbers = #tpu.dot_dimension_numbers<[2], [1], [1], [2], [0, 0, 0, 1, 1, 2], [0], [0]>} : vector<8x1x8xf32>, vector<8x8x32xf32>, vector<8x1x32xf32> -> vector<8x1x32xf32>
    "tpu.trace_stop"() : () -> ()
    %17 = vector.shape_cast %16 : vector<8x1x32xf32> to vector<8x32xf32>
    %c0_7 = arith.constant 0 : index
    %c0_8 = arith.constant 0 : index
    %18 = vector.load %arg3[%c0_7, %c0_8] : memref<8x32xf32, #tpu.memory_space<vmem>>, vector<8x32xf32>
    tpu.vector_store %arg3[%c0_7, %c0_8], %17 {strides = array<i32>} : memref<8x32xf32, #tpu.memory_space<vmem>>, vector<8x32xf32>,
    return
  }
  func.func @transform_0(%arg0: i32) -> (i32, i32, i32) {
    %c0_i32 = arith.constant 0 : i32
    %c0_i32_0 = arith.constant 0 : i32
    %c0_i32_1 = arith.constant 0 : i32
    return %arg0, %c0_i32, %c0_i32_0 : i32, i32, i32
  }
  func.func @transform_1(%arg0: i32) -> (i32, i32) {
    %c0_i32 = arith.constant 0 : i32
    %c0_i32_0 = arith.constant 0 : i32
    %c0_i32_1 = arith.constant 0 : i32
    return %c0_i32, %c0_i32_0 : i32, i32
  }
  func.func @transform_2(%arg0: i32) -> (i32, i32) {
    %c0_i32 = arith.constant 0 : i32
    %c0_i32_0 = arith.constant 0 : i32
    return %arg0, %c0_i32 : i32, i32
  }
}

</mosaic_0001>

<llo_original>
// kernel: tpu_custom_call.1
$region0: #{tpu_custom_call.1}
  #allocation0 [shape = 'u32[]', space=smem, size = 0x4, offset = 0x4, fixed_abs, tag = 'smem constant byte address 0x4 - core index']
  #allocation1 [shape = 'u32[72,128]{1,0:T(1,128)}', space=vmem, size = 0x9000, scoped, tag = 'internal scratch']
  %s0 = inlined_call_operand.hbm [shape: f32[8,8,32], index: 0, kind: input, shape index: {}]
  %s1 = inlined_call_operand.hbm [shape: f32[1,32], index: 1, kind: input, shape index: {}]
  %s2 = inlined_call_operand.hbm [shape: f32[8,32], index: 2, kind: output, shape index: {}]
  %s3 = sld [smem:[#allocation0]]
  $region26: #{tpu_custom_call.1} parent=0
    _
  %s5 = ssub.s32 1, %s3
  %s6 = scalar_select 0, %s5, %s3
  $region1: #{tpu_custom_call.1} parent=0
    #allocation2 [shape = 'u8[32768]{0}', space=vmem, size = 0x8000, scoped, tag = 'input window, operand 0, single buffered']
    #allocation3 [shape = 's32[1]{0}', space=sflag, size = 0x4, scoped, tag = 'scoped memory for tpu_custom_call.1']
    #allocation4 [shape = 's32[1]{0}', space=sflag, size = 0x4, scoped, tag = 'scoped memory for tpu_custom_call.1']
    #allocation5 [shape = 'u8[512]{0}', space=vmem, size = 0x400, scoped, tag = 'input window, operand 1, single buffered']
    #allocation6 [shape = 's32[1]{0}', space=sflag, size = 0x4, scoped, tag = 'scoped memory for tpu_custom_call.1']
    #allocation7 [shape = 'u8[4096]{0}', space=vmem, size = 0x1000, scoped, tag = 'output window, operand 0, single buffered']
    %7 = vsyncpa [#allocation3], 0
    %8 = vsyncpa [#allocation6], 0
    %9 = vsyncpa [#allocation4], 0
    // Predicated region
    $region2: #{tpu_custom_call.1} parent=1 // pred_check
      _
    $region3: #{tpu_custom_call.1} parent=1 // pred_check_branch
      %11 = sbr.rel (0) target = $region5
    $region4: #{tpu_custom_call.1} parent=1 // pred_region
      %13 = vsyncadd [#allocation3], 0
      %s14 = sshll.u32 %s0, 4
      %s15 = int_to_ptr.hbm [resolvable:$true] %s14
      %s16 = sshll.u32 [#allocation2], 4
      %s17 = int_to_ptr.vmem [resolvable:$true] %s16
      %22 = dma.hbm_to_vmem [thread:$0]  %s15, 1024, %s17, [#allocation3], 128, 128, 8
    $region5: #{tpu_custom_call.1} parent=1 // pred_fallthru
      _
    // Predicated region
    $region6: #{tpu_custom_call.1} parent=1 // pred_check
      _
    $region7: #{tpu_custom_call.1} parent=1 // pred_check_branch
      %24 = sbr.rel (0) target = $region9
    $region8: #{tpu_custom_call.1} parent=1 // pred_region
      %26 = vsyncadd [#allocation6], 0
      %s28 = sshll.u32 %s1, 4
      %s29 = int_to_ptr.hbm [resolvable:$true] %s28
      %s30 = sshll.u32 [#allocation5], 4
      %s31 = int_to_ptr.vmem [resolvable:$true] %s30
      %33 = dma.hbm_to_vmem [thread:$0]  %s29, 16, %s31, [#allocation6]
    $region9: #{tpu_custom_call.1} parent=1 // pred_fallthru
      _
    // Predicated region
    $region10: #{tpu_custom_call.1} parent=1 // pred_check
      _
    $region11: #{tpu_custom_call.1} parent=1 // pred_check_branch
      %35 = sbr.rel (0) target = $region13
    $region12: #{tpu_custom_call.1} parent=1 // pred_region
      %37 = dma.done [#allocation3], 1024
    $region13: #{tpu_custom_call.1} parent=1 // pred_fallthru
      _
    // Predicated region
    $region14: #{tpu_custom_call.1} parent=1 // pred_check
      _
    $region15: #{tpu_custom_call.1} parent=1 // pred_check_branch
      %39 = sbr.rel (0) target = $region17
    $region16: #{tpu_custom_call.1} parent=1 // pred_region
      %41 = dma.done [#allocation6], 16
    $region17: #{tpu_custom_call.1} parent=1 // pred_fallthru
      _
    %v42 = vld [vmem:[#allocation2] sm:$0xff]
    %v43 = vld [vmem:[#allocation2 + $0x8] sm:$0xff]
    %v44 = vld [vmem:[#allocation2 + $0x10] sm:$0xff]
    %v45 = vld [vmem:[#allocation2 + $0x18] sm:$0xff]
    %v46 = vld [vmem:[#allocation2 + $0x20] sm:$0xff]
    %v47 = vld [vmem:[#allocation2 + $0x28] sm:$0xff]
    %v48 = vld [vmem:[#allocation2 + $0x30] sm:$0xff]
    %v49 = vld [vmem:[#allocation2 + $0x38] sm:$0xff]
    %v50 = vld [vmem:[#allocation5] sm:$0x1]
    %v52 = vperm.slane %v50, 0
    %v54 = vmul.f32 %v42, %v52
    %v55 = vmul.f32 %v43, %v52
    %v56 = vmul.f32 %v44, %v52
    %v57 = vmul.f32 %v45, %v52
    %v58 = vmul.f32 %v46, %v52
    %v59 = vmul.f32 %v47, %v52
    %v60 = vmul.f32 %v48, %v52
    %v61 = vmul.f32 %v49, %v52
    %vm62 = vcmask 261120
    %v63 = vsel %vm62, %v54, 0.0
    %64 = vadd.xlane.f32.xlu0 %v63
    %v65 = vpop.xlane.xlu0 %64
    %v66 = vsel %vm62, %v55, 0.0
    %67 = vadd.xlane.f32.xlu0 %v66
    %v68 = vpop.xlane.xlu0 %67
    %v69 = vsel %vm62, %v56, 0.0
    %70 = vadd.xlane.f32.xlu0 %v69
    %v71 = vpop.xlane.xlu0 %70
    %v72 = vsel %vm62, %v57, 0.0
    %73 = vadd.xlane.f32.xlu0 %v72
    %v74 = vpop.xlane.xlu0 %73
    %v75 = vsel %vm62, %v58, 0.0
    %76 = vadd.xlane.f32.xlu0 %v75
    %v77 = vpop.xlane.xlu0 %76
    %v78 = vsel %vm62, %v59, 0.0
    %79 = vadd.xlane.f32.xlu0 %v78
    %v80 = vpop.xlane.xlu0 %79
    %v81 = vsel %vm62, %v60, 0.0
    %82 = vadd.xlane.f32.xlu0 %v81
    %v83 = vpop.xlane.xlu0 %82
    %v84 = vsel %vm62, %v61, 0.0
    %85 = vadd.xlane.f32.xlu0 %v84
    %v86 = vpop.xlane.xlu0 %85
    %v95 = vlaneseq
    %v96 = vand.u32 %v95, 127
    %v97 = vperm.slane %v65, %v96
    %v98 = vperm.slane %v68, %v96
    %v99 = vperm.slane %v71, %v96
    %v100 = vperm.slane %v74, %v96
    %v101 = vperm.slane %v77, %v96
    %v102 = vperm.slane %v80, %v96
    %v103 = vperm.slane %v83, %v96
    %v104 = vperm.slane %v86, %v96
    %vm105 = vcmask 1041409
    %v106 = vsel %vm105, %v98, %v97
    %vm107 = vcmask 1042434
    %v108 = vsel %vm107, %v99, %v106
    %vm109 = vcmask 1043459
    %v110 = vsel %vm109, %v100, %v108
    %vm111 = vcmask 1044484
    %v112 = vsel %vm111, %v101, %v110
    %vm113 = vcmask 1045509
    %v114 = vsel %vm113, %v102, %v112
    %vm115 = vcmask 1046534
    %v116 = vsel %vm115, %v103, %v114
    %vm117 = vcmask 1047559
    %v118 = vsel %vm117, %v104, %v116
    %vm120 = vcmask 64512
    %v121 = vsel %vm120, %v118, -inf
    %122 = vmax.xlane.f32.xlu0 %v121
    %v123 = vpop.xlane.xlu0 %122
    %v125 = vperm.slane %v123, 0
    %v126 = vperm.slane %v123, 1
    %v127 = vperm.slane %v123, 2
    %v128 = vperm.slane %v123, 3
    %v129 = vperm.slane %v123, 4
    %v130 = vperm.slane %v123, 5
    %v131 = vperm.slane %v123, 6
    %v132 = vperm.slane %v123, 7
    %v141 = vsub.f32 %v65, %v125
    %v142 = vsub.f32 %v68, %v126
    %v143 = vsub.f32 %v71, %v127
    %v144 = vsub.f32 %v74, %v128
    %v145 = vsub.f32 %v77, %v129
    %v146 = vsub.f32 %v80, %v130
    %v147 = vsub.f32 %v83, %v131
    %v148 = vsub.f32 %v86, %v132
    %v149 = vmul.f32 %v141, 1.442695
    %v150 = vpow.pop %v149
    %v151 = vmul.f32 %v142, 1.442695
    %v152 = vpow.pop %v151
    %v153 = vmul.f32 %v143, 1.442695
    %v154 = vpow.pop %v153
    %v155 = vmul.f32 %v144, 1.442695
    %v156 = vpow.pop %v155
    %v157 = vmul.f32 %v145, 1.442695
    %v158 = vpow.pop %v157
    %v159 = vmul.f32 %v146, 1.442695
    %v160 = vpow.pop %v159
    %v161 = vmul.f32 %v147, 1.442695
    %v162 = vpow.pop %v161
    %v163 = vmul.f32 %v148, 1.442695
    %v164 = vpow.pop %v163
    %173 = vset.pattern.permute.xlu0 0
    %174 = vperm.xlu0 %173, %v150
    %v175 = vpop.permute.xlu0 %174
    %176 = vset.pattern.permute.xlu0 0
    %177 = vperm.xlu0 %176, %v152
    %v178 = vpop.permute.xlu0 %177
    %179 = vset.pattern.permute.xlu0 0
    %180 = vperm.xlu0 %179, %v154
    %v181 = vpop.permute.xlu0 %180
    %182 = vset.pattern.permute.xlu0 0
    %183 = vperm.xlu0 %182, %v156
    %v184 = vpop.permute.xlu0 %183
    %185 = vset.pattern.permute.xlu0 0
    %186 = vperm.xlu0 %185, %v158
    %v187 = vpop.permute.xlu0 %186
    %188 = vset.pattern.permute.xlu0 0
    %189 = vperm.xlu0 %188, %v160
    %v190 = vpop.permute.xlu0 %189
    %191 = vset.pattern.permute.xlu0 0
    %192 = vperm.xlu0 %191, %v162
    %v193 = vpop.permute.xlu0 %192
    %194 = vset.pattern.permute.xlu0 0
    %195 = vperm.xlu0 %194, %v164
    %v196 = vpop.permute.xlu0 %195
    %v197 = vperm.slane %v175, %v96
    %v198 = vperm.slane %v178, %v96
    %v199 = vperm.slane %v181, %v96
    %v200 = vperm.slane %v184, %v96
    %v201 = vperm.slane %v187, %v96
    %v202 = vperm.slane %v190, %v96
    %v203 = vperm.slane %v193, %v96
    %v204 = vperm.slane %v196, %v96
    %v205 = vsel %vm105, %v198, %v197
    %v206 = vsel %vm107, %v199, %v205
    %v207 = vsel %vm109, %v200, %v206
    %v208 = vsel %vm111, %v201, %v207
    %v209 = vsel %vm113, %v202, %v208
    %v210 = vsel %vm115, %v203, %v209
    %v211 = vsel %vm117, %v204, %v210
    %v213 = vsel %vm120, %v211, 0.0
    %214 = vadd.xlane.f32.xlu0 %v213
    %v215 = vpop.xlane.xlu0 %214
    %v217 = vperm.slane %v215, 0
    %v218 = vperm.slane %v215, 1
    %v219 = vperm.slane %v215, 2
    %v220 = vperm.slane %v215, 3
    %v221 = vperm.slane %v215, 4
    %v222 = vperm.slane %v215, 5
    %v223 = vperm.slane %v215, 6
    %v224 = vperm.slane %v215, 7
    %v233 = vrcp.pop %v217
    %v234 = vmul.f32 %v217, %v233
    %v235 = vsub.f32 1.0, %v234
    %v236 = vmul.f32 %v233, %v235
    %v237 = vadd.f32 %v233, %v236
    %vm238 = vweird.f32 %v217
    %vm239 = vweird.f32 %v233
    %vm240 = vmor %vm238, %vm239
    %v241 = vsel %vm240, %v233, %v237
    %v242 = vand.u32 2147483647, %v217
    %vm243 = vcmp.eq.f32.partialorder %v242, 8.507059e+37
    %v244 = vand.u32 %v217, 2147483648
    %v245 = vor.u32 1.1754944e-38, %v244
    %v246 = vsel %vm243, %v245, %v241
    %v247 = vmul.f32 %v150, %v246
    %v248 = vrcp.pop %v218
    %v249 = vmul.f32 %v218, %v248
    %v250 = vsub.f32 1.0, %v249
    %v251 = vmul.f32 %v248, %v250
    %v252 = vadd.f32 %v248, %v251
    %vm253 = vweird.f32 %v218
    %vm254 = vweird.f32 %v248
    %vm255 = vmor %vm253, %vm254
    %v256 = vsel %vm255, %v248, %v252
    %v257 = vand.u32 2147483647, %v218
    %vm258 = vcmp.eq.f32.partialorder %v257, 8.507059e+37
    %v259 = vand.u32 %v218, 2147483648
    %v260 = vor.u32 1.1754944e-38, %v259
    %v261 = vsel %vm258, %v260, %v256
    %v262 = vmul.f32 %v152, %v261
    %v263 = vrcp.pop %v219
    %v264 = vmul.f32 %v219, %v263
    %v265 = vsub.f32 1.0, %v264
    %v266 = vmul.f32 %v263, %v265
    %v267 = vadd.f32 %v263, %v266
    %vm268 = vweird.f32 %v219
    %vm269 = vweird.f32 %v263
    %vm270 = vmor %vm268, %vm269
    %v271 = vsel %vm270, %v263, %v267
    %v272 = vand.u32 2147483647, %v219
    %vm273 = vcmp.eq.f32.partialorder %v272, 8.507059e+37
    %v274 = vand.u32 %v219, 2147483648
    %v275 = vor.u32 1.1754944e-38, %v274
    %v276 = vsel %vm273, %v275, %v271
    %v277 = vmul.f32 %v154, %v276
    %v278 = vrcp.pop %v220
    %v279 = vmul.f32 %v220, %v278
    %v280 = vsub.f32 1.0, %v279
    %v281 = vmul.f32 %v278, %v280
    %v282 = vadd.f32 %v278, %v281
    %vm283 = vweird.f32 %v220
    %vm284 = vweird.f32 %v278
    %vm285 = vmor %vm283, %vm284
    %v286 = vsel %vm285, %v278, %v282
    %v287 = vand.u32 2147483647, %v220
    %vm288 = vcmp.eq.f32.partialorder %v287, 8.507059e+37
    %v289 = vand.u32 %v220, 2147483648
    %v290 = vor.u32 1.1754944e-38, %v289
    %v291 = vsel %vm288, %v290, %v286
    %v292 = vmul.f32 %v156, %v291
    %v293 = vrcp.pop %v221
    %v294 = vmul.f32 %v221, %v293
    %v295 = vsub.f32 1.0, %v294
    %v296 = vmul.f32 %v293, %v295
    %v297 = vadd.f32 %v293, %v296
    %vm298 = vweird.f32 %v221
    %vm299 = vweird.f32 %v293
    %vm300 = vmor %vm298, %vm299
    %v301 = vsel %vm300, %v293, %v297
    %v302 = vand.u32 2147483647, %v221
    %vm303 = vcmp.eq.f32.partialorder %v302, 8.507059e+37
    %v304 = vand.u32 %v221, 2147483648
    %v305 = vor.u32 1.1754944e-38, %v304
    %v306 = vsel %vm303, %v305, %v301
    %v307 = vmul.f32 %v158, %v306
    %v308 = vrcp.pop %v222
    %v309 = vmul.f32 %v222, %v308
    %v310 = vsub.f32 1.0, %v309
    %v311 = vmul.f32 %v308, %v310
    %v312 = vadd.f32 %v308, %v311
    %vm313 = vweird.f32 %v222
    %vm314 = vweird.f32 %v308
    %vm315 = vmor %vm313, %vm314
    %v316 = vsel %vm315, %v308, %v312
    %v317 = vand.u32 2147483647, %v222
    %vm318 = vcmp.eq.f32.partialorder %v317, 8.507059e+37
    %v319 = vand.u32 %v222, 2147483648
    %v320 = vor.u32 1.1754944e-38, %v319
    %v321 = vsel %vm318, %v320, %v316
    %v322 = vmul.f32 %v160, %v321
    %v323 = vrcp.pop %v223
    %v324 = vmul.f32 %v223, %v323
    %v325 = vsub.f32 1.0, %v324
    %v326 = vmul.f32 %v323, %v325
    %v327 = vadd.f32 %v323, %v326
    %vm328 = vweird.f32 %v223
    %vm329 = vweird.f32 %v323
    %vm330 = vmor %vm328, %vm329
    %v331 = vsel %vm330, %v323, %v327
    %v332 = vand.u32 2147483647, %v223
    %vm333 = vcmp.eq.f32.partialorder %v332, 8.507059e+37
    %v334 = vand.u32 %v223, 2147483648
    %v335 = vor.u32 1.1754944e-38, %v334
    %v336 = vsel %vm333, %v335, %v331
    %v337 = vmul.f32 %v162, %v336
    %v338 = vrcp.pop %v224
    %v339 = vmul.f32 %v224, %v338
    %v340 = vsub.f32 1.0, %v339
    %v341 = vmul.f32 %v338, %v340
    %v342 = vadd.f32 %v338, %v341
    %vm343 = vweird.f32 %v224
    %vm344 = vweird.f32 %v338
    %vm345 = vmor %vm343, %vm344
    %v346 = vsel %vm345, %v338, %v342
    %v347 = vand.u32 2147483647, %v224
    %vm348 = vcmp.eq.f32.partialorder %v347, 8.507059e+37
    %v349 = vand.u32 %v224, 2147483648
    %v350 = vor.u32 1.1754944e-38, %v349
    %v351 = vsel %vm348, %v350, %v346
    %v352 = vmul.f32 %v164, %v351
    %354 = vset.pattern.permute.xlu0 0
    %355 = vperm.xlu0 %354, %v247
    %v356 = vpop.permute.xlu0 %355
    %v357 = vperm.slane %v356, %v96
    %v358 = vsel %vm120, %v357, 0
    %360 = vmatpush.msra.mxu0 0.0
    %361 = vmatpush.msra.mxu0 0.0
    %362 = vmatpush.msra.mxu0 0.0
    %363 = vmatpush.msra.mxu0 0.0
    %364 = vmatpush.msra.mxu0 0.0
    %365 = vmatpush.msra.mxu0 0.0
    %366 = vmatpush.msra.mxu0 0.0
    %367 = vmatpush.msra.mxu0 0.0
    %368 = vmatpush.msra.mxu0 0.0
    %369 = vmatpush.msra.mxu0 0.0
    %370 = vmatpush.msra.mxu0 0.0
    %371 = vmatpush.msra.mxu0 0.0
    %372 = vmatpush.msra.mxu0 0.0
    %373 = vmatpush.msra.mxu0 0.0
    %374 = vmatpush.msra.mxu0 0.0
    %375 = vmatpush.msra.mxu0 %v42
    %376 = vmatmul.f32.gmra.mxu0 %v358
    %v377 = vpop.f32.mrf.mxu0
    %v378 = vadd.f32 0.0, %v377
    %379 = vdwg.mxu0
    %381 = vset.pattern.permute.xlu0 0
    %382 = vperm.xlu0 %381, %v262
    %v383 = vpop.permute.xlu0 %382
    %v384 = vperm.slane %v383, %v96
    %v385 = vsel %vm120, %v384, 0
    %387 = vmatpush.msra.mxu0 0.0
    %388 = vmatpush.msra.mxu0 0.0
    %389 = vmatpush.msra.mxu0 0.0
    %390 = vmatpush.msra.mxu0 0.0
    %391 = vmatpush.msra.mxu0 0.0
    %392 = vmatpush.msra.mxu0 0.0
    %393 = vmatpush.msra.mxu0 0.0
    %394 = vmatpush.msra.mxu0 0.0
    %395 = vmatpush.msra.mxu0 0.0
    %396 = vmatpush.msra.mxu0 0.0
    %397 = vmatpush.msra.mxu0 0.0
    %398 = vmatpush.msra.mxu0 0.0
    %399 = vmatpush.msra.mxu0 0.0
    %400 = vmatpush.msra.mxu0 0.0
    %401 = vmatpush.msra.mxu0 0.0
    %402 = vmatpush.msra.mxu0 %v43
    %403 = vmatmul.f32.gmra.mxu0 %v385
    %v404 = vpop.f32.mrf.mxu0
    %v405 = vadd.f32 0.0, %v404
    %406 = vdwg.mxu0
    %408 = vset.pattern.permute.xlu0 0
    %409 = vperm.xlu0 %408, %v277
    %v410 = vpop.permute.xlu0 %409
    %v411 = vperm.slane %v410, %v96
    %v412 = vsel %vm120, %v411, 0
    %414 = vmatpush.msra.mxu0 0.0
    %415 = vmatpush.msra.mxu0 0.0
    %416 = vmatpush.msra.mxu0 0.0
    %417 = vmatpush.msra.mxu0 0.0
    %418 = vmatpush.msra.mxu0 0.0
    %419 = vmatpush.msra.mxu0 0.0
    %420 = vmatpush.msra.mxu0 0.0
    %421 = vmatpush.msra.mxu0 0.0
    %422 = vmatpush.msra.mxu0 0.0
    %423 = vmatpush.msra.mxu0 0.0
    %424 = vmatpush.msra.mxu0 0.0
    %425 = vmatpush.msra.mxu0 0.0
    %426 = vmatpush.msra.mxu0 0.0
    %427 = vmatpush.msra.mxu0 0.0
    %428 = vmatpush.msra.mxu0 0.0
    %429 = vmatpush.msra.mxu0 %v44
    %430 = vmatmul.f32.gmra.mxu0 %v412
    %v431 = vpop.f32.mrf.mxu0
    %v432 = vadd.f32 0.0, %v431
    %433 = vdwg.mxu0
    %435 = vset.pattern.permute.xlu0 0
    %436 = vperm.xlu0 %435, %v292
    %v437 = vpop.permute.xlu0 %436
    %v438 = vperm.slane %v437, %v96
    %v439 = vsel %vm120, %v438, 0
    %441 = vmatpush.msra.mxu0 0.0
    %442 = vmatpush.msra.mxu0 0.0
    %443 = vmatpush.msra.mxu0 0.0
    %444 = vmatpush.msra.mxu0 0.0
    %445 = vmatpush.msra.mxu0 0.0
    %446 = vmatpush.msra.mxu0 0.0
    %447 = vmatpush.msra.mxu0 0.0
    %448 = vmatpush.msra.mxu0 0.0
    %449 = vmatpush.msra.mxu0 0.0
    %450 = vmatpush.msra.mxu0 0.0
    %451 = vmatpush.msra.mxu0 0.0
    %452 = vmatpush.msra.mxu0 0.0
    %453 = vmatpush.msra.mxu0 0.0
    %454 = vmatpush.msra.mxu0 0.0
    %455 = vmatpush.msra.mxu0 0.0
    %456 = vmatpush.msra.mxu0 %v45
    %457 = vmatmul.f32.gmra.mxu0 %v439
    %v458 = vpop.f32.mrf.mxu0
    %v459 = vadd.f32 0.0, %v458
    %460 = vdwg.mxu0
    %462 = vset.pattern.permute.xlu0 0
    %463 = vperm.xlu0 %462, %v307
    %v464 = vpop.permute.xlu0 %463
    %v465 = vperm.slane %v464, %v96
    %v466 = vsel %vm120, %v465, 0
    %468 = vmatpush.msra.mxu0 0.0
    %469 = vmatpush.msra.mxu0 0.0
    %470 = vmatpush.msra.mxu0 0.0
    %471 = vmatpush.msra.mxu0 0.0
    %472 = vmatpush.msra.mxu0 0.0
    %473 = vmatpush.msra.mxu0 0.0
    %474 = vmatpush.msra.mxu0 0.0
    %475 = vmatpush.msra.mxu0 0.0
    %476 = vmatpush.msra.mxu0 0.0
    %477 = vmatpush.msra.mxu0 0.0
    %478 = vmatpush.msra.mxu0 0.0
    %479 = vmatpush.msra.mxu0 0.0
    %480 = vmatpush.msra.mxu0 0.0
    %481 = vmatpush.msra.mxu0 0.0
    %482 = vmatpush.msra.mxu0 0.0
    %483 = vmatpush.msra.mxu0 %v46
    %484 = vmatmul.f32.gmra.mxu0 %v466
    %v485 = vpop.f32.mrf.mxu0
    %v486 = vadd.f32 0.0, %v485
    %487 = vdwg.mxu0
    %489 = vset.pattern.permute.xlu0 0
    %490 = vperm.xlu0 %489, %v322
    %v491 = vpop.permute.xlu0 %490
    %v492 = vperm.slane %v491, %v96
    %v493 = vsel %vm120, %v492, 0
    %495 = vmatpush.msra.mxu0 0.0
    %496 = vmatpush.msra.mxu0 0.0
    %497 = vmatpush.msra.mxu0 0.0
    %498 = vmatpush.msra.mxu0 0.0
    %499 = vmatpush.msra.mxu0 0.0
    %500 = vmatpush.msra.mxu0 0.0
    %501 = vmatpush.msra.mxu0 0.0
    %502 = vmatpush.msra.mxu0 0.0
    %503 = vmatpush.msra.mxu0 0.0
    %504 = vmatpush.msra.mxu0 0.0
    %505 = vmatpush.msra.mxu0 0.0
    %506 = vmatpush.msra.mxu0 0.0
    %507 = vmatpush.msra.mxu0 0.0
    %508 = vmatpush.msra.mxu0 0.0
    %509 = vmatpush.msra.mxu0 0.0
    %510 = vmatpush.msra.mxu0 %v47
    %511 = vmatmul.f32.gmra.mxu0 %v493
    %v512 = vpop.f32.mrf.mxu0
    %v513 = vadd.f32 0.0, %v512
    %514 = vdwg.mxu0
    %516 = vset.pattern.permute.xlu0 0
    %517 = vperm.xlu0 %516, %v337
    %v518 = vpop.permute.xlu0 %517
    %v519 = vperm.slane %v518, %v96
    %v520 = vsel %vm120, %v519, 0
    %522 = vmatpush.msra.mxu0 0.0
    %523 = vmatpush.msra.mxu0 0.0
    %524 = vmatpush.msra.mxu0 0.0
    %525 = vmatpush.msra.mxu0 0.0
    %526 = vmatpush.msra.mxu0 0.0
    %527 = vmatpush.msra.mxu0 0.0
    %528 = vmatpush.msra.mxu0 0.0
    %529 = vmatpush.msra.mxu0 0.0
    %530 = vmatpush.msra.mxu0 0.0
    %531 = vmatpush.msra.mxu0 0.0
    %532 = vmatpush.msra.mxu0 0.0
    %533 = vmatpush.msra.mxu0 0.0
    %534 = vmatpush.msra.mxu0 0.0
    %535 = vmatpush.msra.mxu0 0.0
    %536 = vmatpush.msra.mxu0 0.0
    %537 = vmatpush.msra.mxu0 %v48
    %538 = vmatmul.f32.gmra.mxu0 %v520
    %v539 = vpop.f32.mrf.mxu0
    %v540 = vadd.f32 0.0, %v539
    %541 = vdwg.mxu0
    %543 = vset.pattern.permute.xlu0 0
    %544 = vperm.xlu0 %543, %v352
    %v545 = vpop.permute.xlu0 %544
    %v546 = vperm.slane %v545, %v96
    %v547 = vsel %vm120, %v546, 0
    %549 = vmatpush.msra.mxu0 0.0
    %550 = vmatpush.msra.mxu0 0.0
    %551 = vmatpush.msra.mxu0 0.0
    %552 = vmatpush.msra.mxu0 0.0
    %553 = vmatpush.msra.mxu0 0.0
    %554 = vmatpush.msra.mxu0 0.0
    %555 = vmatpush.msra.mxu0 0.0
    %556 = vmatpush.msra.mxu0 0.0
    %557 = vmatpush.msra.mxu0 0.0
    %558 = vmatpush.msra.mxu0 0.0
    %559 = vmatpush.msra.mxu0 0.0
    %560 = vmatpush.msra.mxu0 0.0
    %561 = vmatpush.msra.mxu0 0.0
    %562 = vmatpush.msra.mxu0 0.0
    %563 = vmatpush.msra.mxu0 0.0
    %564 = vmatpush.msra.mxu0 %v49
    %565 = vmatmul.f32.gmra.mxu0 %v547
    %v566 = vpop.f32.mrf.mxu0
    %v567 = vadd.f32 0.0, %v566
    %568 = vdwg.mxu0
    %v577 = vrot.slane %v405, 7
    %v578 = vsel %vm105, %v577, %v378
    %v579 = vrot.slane %v432, 6
    %v580 = vsel %vm107, %v579, %v578
    %v581 = vrot.slane %v459, 5
    %v582 = vsel %vm109, %v581, %v580
    %v583 = vrot.slane %v486, 4
    %v584 = vsel %vm111, %v583, %v582
    %v585 = vrot.slane %v513, 3
    %v586 = vsel %vm113, %v585, %v584
    %v587 = vrot.slane %v540, 2
    %v588 = vsel %vm115, %v587, %v586
    %v589 = vrot.slane %v567, 1
    %v590 = vsel %vm117, %v589, %v588
    %592 = vst.msk [vmem:[#allocation7] sm:$0xff] %vm62, %v590
    // Predicated region
    $region18: #{tpu_custom_call.1} parent=1 // pred_check
      _
    $region19: #{tpu_custom_call.1} parent=1 // pred_check_branch
      %594 = sbr.rel (0) target = $region21
    $region20: #{tpu_custom_call.1} parent=1 // pred_region
      %596 = vsyncadd [#allocation4], 0
      %s598 = sshll.u32 [#allocation7], 4
      %s599 = int_to_ptr.vmem [resolvable:$true] %s598
      %s600 = sshll.u32 %s2, 4
      %s601 = int_to_ptr.hbm [resolvable:$true] %s600
      %603 = dma.vmem_to_hbm [thread:$0]  %s599, 128, %s601, [#allocation4]
    $region21: #{tpu_custom_call.1} parent=1 // pred_fallthru
      _
    // Predicated region
    $region22: #{tpu_custom_call.1} parent=1 // pred_check
      _
    $region23: #{tpu_custom_call.1} parent=1 // pred_check_branch
      %605 = sbr.rel (0) target = $region25
    $region24: #{tpu_custom_call.1} parent=1 // pred_region
      %607 = dma.done [#allocation4], 128
    $region25: #{tpu_custom_call.1} parent=1 // pred_fallthru
      _
    %608 = vsyncpa [#allocation3], 1
    %609 = vsyncpa [#allocation6], 1
    %610 = vsyncpa [#allocation4], 1

</llo_original>
